<compile_context>
chip_gen: v6e
topology: v6e:2x2x1
jax: 0.10.0
libtpu: 0.0.40
codegen_flags: <defaults>
</compile_context>

<pallas_src>
import functools

import jax
import jax.numpy as jnp
from jax.experimental import pallas as pl
from jax.experimental.pallas import tpu as pltpu


def _gelu_exact(x):
    # Matches torch.nn.functional.gelu default (erf-based, not tanh approx).
    return 0.5 * x * (1.0 + jax.lax.erf(x * 0.7071067811865476))


def _round_up(v, m):
    return (v + m - 1) // m * m


def mlp_kernel(x_ref, w1_ref, b1_ref, w2_ref, b2_ref, w3_ref, b3_ref, o_ref,
               *, compute_dtype):
    # Native-dtype read; cast on the VPU (free under the memory-bound regime).
    x = x_ref[...].astype(compute_dtype)                     # (tm, in_dim)

    # fc1 + GELU (f32 accumulate, f32 activation, cast back for next MXU push)
    h1 = jnp.dot(x, w1_ref[...], preferred_element_type=jnp.float32) + b1_ref[...]
    h1 = _gelu_exact(h1).astype(compute_dtype)

    # fc2 + GELU
    h2 = jnp.dot(h1, w2_ref[...], preferred_element_type=jnp.float32) + b2_ref[...]
    h2 = _gelu_exact(h2).astype(compute_dtype)

    # fc3 -> narrow (tm, out_dim) store (unpadded output, tiny writeback)
    out = jnp.dot(h2, w3_ref[...], preferred_element_type=jnp.float32) + b3_ref[...]
    o_ref[...] = out.astype(o_ref.dtype)


@functools.partial(jax.jit, static_argnames=("compute_dtype", "tm"))
def mlp_forward(x, w1, b1, w2, b2, w3, b3, *, compute_dtype=jnp.bfloat16, tm=1024):
    """x: (batch, seq, 3*hidden) -> (batch, seq, 2)."""
    B, S, in_dim = x.shape
    M = B * S
    mlp_dim = w1.shape[1]
    hidden = w2.shape[1]
    out_dim = w3.shape[1]

    # Row tile: large for pipelining / HBM roofline, clamped so the grid has
    # at least 2 steps (both v7x TensorCores busy) and stays a multiple of 8.
    tm = max(8, min(tm, _round_up(pl.cdiv(M, 2), 8)))
    grid = (pl.cdiv(M, tm),)

    # No pad / no dtype round trip on the big streaming input.
    x2d = x.reshape(M, in_dim)

    # Weights/biases are tiny: one cheap cast, then VMEM-resident all grid long.
    w1c = w1.astype(compute_dtype)
    w2c = w2.astype(compute_dtype)
    w3c = w3.astype(compute_dtype)
    b1f = b1.astype(jnp.float32)
    b2f = b2.astype(jnp.float32)
    b3f = b3.astype(jnp.float32)

    kernel = functools.partial(mlp_kernel, compute_dtype=compute_dtype)

    out = pl.pallas_call(
        kernel,
        out_shape=jax.ShapeDtypeStruct((M, out_dim), x.dtype),
        grid_spec=pltpu.PrefetchScalarGridSpec(
            num_scalar_prefetch=0,
            grid=grid,
            in_specs=[
                # x tile: marches over M; last block dim == full array dim.
                pl.BlockSpec((tm, in_dim), lambda i: (i, 0)),
                # weights / biases: VMEM-resident across all M tiles
                pl.BlockSpec((in_dim, mlp_dim), lambda i: (0, 0)),
                pl.BlockSpec((1, mlp_dim), lambda i: (0, 0)),
                pl.BlockSpec((mlp_dim, hidden), lambda i: (0, 0)),
                pl.BlockSpec((1, hidden), lambda i: (0, 0)),
                pl.BlockSpec((hidden, out_dim), lambda i: (0, 0)),
                pl.BlockSpec((1, out_dim), lambda i: (0, 0)),
            ],
            out_specs=pl.BlockSpec((tm, out_dim), lambda i: (i, 0)),
        ),
        compiler_params=pltpu.CompilerParams(
            dimension_semantics=("parallel",),
            vmem_limit_bytes=32 * 1024 * 1024,
        ),
    )(x2d, w1c, b1f, w2c, b2f, w3c, b3f)

    return out.reshape(B, S, out_dim)


def _xavier_uniform(key, fan_in, fan_out, dtype=jnp.float32):
    limit = jnp.sqrt(6.0 / (fan_in + fan_out))
    return jax.random.uniform(key, (fan_in, fan_out), dtype=dtype,
                              minval=-limit, maxval=limit)


def init_params(key, hidden_size, mlp_dim, dtype=jnp.float32):
    k1, k2, k3, k4, k5, k6 = jax.random.split(key, 6)
    in_dim = 3 * hidden_size
    # Weights stored as (in, out) so forward is x @ W (equivalent to torch
    # x @ W.T with torch W of shape (out, in)).
    w1 = _xavier_uniform(k1, in_dim, mlp_dim, dtype)
    w2 = _xavier_uniform(k2, mlp_dim, hidden_size, dtype)
    w3 = _xavier_uniform(k3, hidden_size, 2, dtype)
    b1 = (1e-6 * jax.random.normal(k4, (1, mlp_dim))).astype(dtype)
    b2 = (1e-6 * jax.random.normal(k5, (1, hidden_size))).astype(dtype)
    b3 = (1e-6 * jax.random.normal(k6, (1, 2))).astype(dtype)
    return w1, b1, w2, b2, w3, b3


def reference_forward(x, w1, b1, w2, b2, w3, b3):
    h = jax.nn.gelu(x @ w1 + b1, approximate=False)
    h = jax.nn.gelu(h @ w2 + b2, approximate=False)
    return h @ w3 + b3


if __name__ == "__main__":
    # Config consistent with the module: hidden_size, mlp_dim.
    hidden_size, mlp_dim = 32, 64
    key = jax.random.PRNGKey(0)
    kx, kp, kx2 = jax.random.split(key, 3)
    params = init_params(kp, hidden_size, mlp_dim)

    # Case 1: tiny shape (grid of 2 small tiles, partial/edge handling exercised
    # only by BlockSpec machinery; rows are independent).
    batch, seq = 2, 8
    x = jax.random.normal(kx, (batch, seq, 3 * hidden_size), dtype=jnp.float32)
    ref = reference_forward(x, *params)

    # Exact f32 compute path: tight tolerance vs the f32 reference.
    out_f32 = jax.block_until_ready(
        mlp_forward(x, *params, compute_dtype=jnp.float32))
    assert out_f32.shape == (batch, seq, 2)
    assert jnp.allclose(out_f32, ref, atol=1e-5, rtol=1e-5), "f32 mismatch vs reference"

    # bf16 MXU path: relaxed tolerance (bf16 operands, f32 accumulation).
    out_bf16 = jax.block_until_ready(
        mlp_forward(x, *params, compute_dtype=jnp.bfloat16))
    assert out_bf16.shape == (batch, seq, 2)
    assert jnp.allclose(out_bf16, ref, atol=5e-2, rtol=5e-2), "bf16 mismatch vs reference"

    # Case 2: larger M so the grid actually tiles (M=2048, tm=1024, grid=(2,)).
    batch2, seq2 = 2, 1024
    x2 = jax.random.normal(kx2, (batch2, seq2, 3 * hidden_size), dtype=jnp.float32)
    ref2 = reference_forward(x2, *params)
    out2 = jax.block_until_ready(
        mlp_forward(x2, *params, compute_dtype=jnp.bfloat16, tm=1024))
    assert out2.shape == (batch2, seq2, 2)
    assert jnp.allclose(out2, ref2, atol=5e-2, rtol=5e-2), "tiled bf16 mismatch vs reference"

    print("KERNEL_OK")
</pallas_src>

<mosaic_0001>
module attributes {stable_mosaic.version = 11 : i64} {
  func.func @mlp_kernel(%arg0: i32, %arg1: memref<8x96xf32, #tpu.memory_space<vmem>>, %arg2: memref<96x64xf32, #tpu.memory_space<vmem>>, %arg3: memref<1x64xf32, #tpu.memory_space<vmem>>, %arg4: memref<64x32xf32, #tpu.memory_space<vmem>>, %arg5: memref<1x32xf32, #tpu.memory_space<vmem>>, %arg6: memref<32x2xf32, #tpu.memory_space<vmem>>, %arg7: memref<1x2xf32, #tpu.memory_space<vmem>>, %arg8: memref<8x2xf32, #tpu.memory_space<vmem>>) attributes {dimension_semantics = [#tpu.dimension_semantics<parallel>], iteration_bounds = array<i64: 2>, scalar_prefetch = 0 : i64, scratch_operands = 0 : i64, tpu.core_type = #tpu.core_type<tc>, window_params = [{transform_indices = @transform_0, window_bounds = array<i64: 8, 96>}, {pipeline_mode = #tpu.pipeline_mode<synchronous>, transform_indices = @transform_1, window_bounds = array<i64: 96, 64>}, {pipeline_mode = #tpu.pipeline_mode<synchronous>, transform_indices = @transform_2, window_bounds = array<i64: 1, 64>}, {pipeline_mode = #tpu.pipeline_mode<synchronous>, transform_indices = @transform_3, window_bounds = array<i64: 64, 32>}, {pipeline_mode = #tpu.pipeline_mode<synchronous>, transform_indices = @transform_4, window_bounds = array<i64: 1, 32>}, {pipeline_mode = #tpu.pipeline_mode<synchronous>, transform_indices = @transform_5, window_bounds = array<i64: 32, 2>}, {pipeline_mode = #tpu.pipeline_mode<synchronous>, transform_indices = @transform_6, window_bounds = array<i64: 1, 2>}, {transform_indices = @transform_7, window_bounds = array<i64: 8, 2>}]} {
    %c0 = arith.constant 0 : index
    %c0_0 = arith.constant 0 : index
    %0 = vector.load %arg1[%c0, %c0_0] : memref<8x96xf32, #tpu.memory_space<vmem>>, vector<8x96xf32>
    %c0_1 = arith.constant 0 : index
    %c0_2 = arith.constant 0 : index
    %1 = vector.load %arg2[%c0_1, %c0_2] : memref<96x64xf32, #tpu.memory_space<vmem>>, vector<96x64xf32>
    %cst = arith.constant dense<0.000000e+00> : vector<8x64xf32>
    %2 = tpu.matmul %0, %1, %cst {dimension_numbers = #tpu.dot_dimension_numbers<[1], [0], [0], [1], [0, 0, 1, 1], [], []>} : vector<8x96xf32>, vector<96x64xf32>, vector<8x64xf32> -> vector<8x64xf32>
    %c0_3 = arith.constant 0 : index
    %c0_4 = arith.constant 0 : index
    %3 = vector.load %arg3[%c0_3, %c0_4] : memref<1x64xf32, #tpu.memory_space<vmem>>, vector<1x64xf32>
    %4 = vector.broadcast %3 : vector<1x64xf32> to vector<8x64xf32>
    %5 = arith.addf %2, %4 : vector<8x64xf32>
    %cst_5 = arith.constant 5.000000e-01 : f32
    %6 = vector.broadcast %cst_5 : f32 to vector<8x64xf32>
    %7 = arith.mulf %6, %5 : vector<8x64xf32>
    %cst_6 = arith.constant 0.707106769 : f32
    %8 = vector.broadcast %cst_6 : f32 to vector<8x64xf32>
    %9 = arith.mulf %5, %8 : vector<8x64xf32>
    %10 = math.erf %9 : vector<8x64xf32>
    %cst_7 = arith.constant 1.000000e+00 : f32
    %11 = vector.broadcast %cst_7 : f32 to vector<8x64xf32>
    %12 = arith.addf %11, %10 : vector<8x64xf32>
    %13 = arith.mulf %7, %12 : vector<8x64xf32>
    %c0_8 = arith.constant 0 : index
    %c0_9 = arith.constant 0 : index
    %14 = vector.load %arg4[%c0_8, %c0_9] : memref<64x32xf32, #tpu.memory_space<vmem>>, vector<64x32xf32>
    %cst_10 = arith.constant dense<0.000000e+00> : vector<8x32xf32>
    %15 = tpu.matmul %13, %14, %cst_10 {dimension_numbers = #tpu.dot_dimension_numbers<[1], [0], [0], [1], [0, 0, 1, 1], [], []>} : vector<8x64xf32>, vector<64x32xf32>, vector<8x32xf32> -> vector<8x32xf32>
    %c0_11 = arith.constant 0 : index
    %c0_12 = arith.constant 0 : index
    %16 = vector.load %arg5[%c0_11, %c0_12] : memref<1x32xf32, #tpu.memory_space<vmem>>, vector<1x32xf32>
    %17 = vector.broadcast %16 : vector<1x32xf32> to vector<8x32xf32>
    %18 = arith.addf %15, %17 : vector<8x32xf32>
    %cst_13 = arith.constant 5.000000e-01 : f32
    %19 = vector.broadcast %cst_13 : f32 to vector<8x32xf32>
    %20 = arith.mulf %19, %18 : vector<8x32xf32>
    %cst_14 = arith.constant 0.707106769 : f32
    %21 = vector.broadcast %cst_14 : f32 to vector<8x32xf32>
    %22 = arith.mulf %18, %21 : vector<8x32xf32>
    %23 = math.erf %22 : vector<8x32xf32>
    %cst_15 = arith.constant 1.000000e+00 : f32
    %24 = vector.broadcast %cst_15 : f32 to vector<8x32xf32>
    %25 = arith.addf %24, %23 : vector<8x32xf32>
    %26 = arith.mulf %20, %25 : vector<8x32xf32>
    %c0_16 = arith.constant 0 : index
    %c0_17 = arith.constant 0 : index
    %27 = vector.load %arg6[%c0_16, %c0_17] : memref<32x2xf32, #tpu.memory_space<vmem>>, vector<32x2xf32>
    %cst_18 = arith.constant dense<0.000000e+00> : vector<8x2xf32>
    %28 = tpu.matmul %26, %27, %cst_18 {dimension_numbers = #tpu.dot_dimension_numbers<[1], [0], [0], [1], [0, 0, 1, 1], [], []>} : vector<8x32xf32>, vector<32x2xf32>, vector<8x2xf32> -> vector<8x2xf32>
    %c0_19 = arith.constant 0 : index
    %c0_20 = arith.constant 0 : index
    %29 = vector.load %arg7[%c0_19, %c0_20] : memref<1x2xf32, #tpu.memory_space<vmem>>, vector<1x2xf32>
    %30 = vector.broadcast %29 : vector<1x2xf32> to vector<8x2xf32>
    %31 = arith.addf %28, %30 : vector<8x2xf32>
    %c0_21 = arith.constant 0 : index
    %c0_22 = arith.constant 0 : index
    %32 = vector.load %arg8[%c0_21, %c0_22] : memref<8x2xf32, #tpu.memory_space<vmem>>, vector<8x2xf32>
    tpu.vector_store %arg8[%c0_21, %c0_22], %31 {strides = array<i32>} : memref<8x2xf32, #tpu.memory_space<vmem>>, vector<8x2xf32>,
    return
  }
  func.func @transform_0(%arg0: i32) -> (i32, i32) {
    %c0_i32 = arith.constant 0 : i32
    %c0_i32_0 = arith.constant 0 : i32
    return %arg0, %c0_i32 : i32, i32
  }
  func.func @transform_1(%arg0: i32) -> (i32, i32) {
    %c0_i32 = arith.constant 0 : i32
    %c0_i32_0 = arith.constant 0 : i32
    %c0_i32_1 = arith.constant 0 : i32
    return %c0_i32, %c0_i32_0 : i32, i32
  }
  func.func @transform_2(%arg0: i32) -> (i32, i32) {
    %c0_i32 = arith.constant 0 : i32
    %c0_i32_0 = arith.constant 0 : i32
    %c0_i32_1 = arith.constant 0 : i32
    return %c0_i32, %c0_i32_0 : i32, i32
  }
  func.func @transform_3(%arg0: i32) -> (i32, i32) {
    %c0_i32 = arith.constant 0 : i32
    %c0_i32_0 = arith.constant 0 : i32
    %c0_i32_1 = arith.constant 0 : i32
    return %c0_i32, %c0_i32_0 : i32, i32
  }
  func.func @transform_4(%arg0: i32) -> (i32, i32) {
    %c0_i32 = arith.constant 0 : i32
    %c0_i32_0 = arith.constant 0 : i32
    %c0_i32_1 = arith.constant 0 : i32
    return %c0_i32, %c0_i32_0 : i32, i32
  }
  func.func @transform_5(%arg0: i32) -> (i32, i32) {
    %c0_i32 = arith.constant 0 : i32
    %c0_i32_0 = arith.constant 0 : i32
    %c0_i32_1 = arith.constant 0 : i32
    return %c0_i32, %c0_i32_0 : i32, i32
  }
  func.func @transform_6(%arg0: i32) -> (i32, i32) {
    %c0_i32 = arith.constant 0 : i32
    %c0_i32_0 = arith.constant 0 : i32
    %c0_i32_1 = arith.constant 0 : i32
    return %c0_i32, %c0_i32_0 : i32, i32
  }
  func.func @transform_7(%arg0: i32) -> (i32, i32) {
    %c0_i32 = arith.constant 0 : i32
    %c0_i32_0 = arith.constant 0 : i32
    return %arg0, %c0_i32 : i32, i32
  }
}

</mosaic_0001>

<llo_original>
// kernel: mlp_forward.1
$region0: #{mlp_forward.1}
  #allocation0 [shape = 'u32[]', space=smem, size = 0x4, offset = 0x4, fixed_abs, tag = 'smem constant byte address 0x4 - core index']
  #allocation1 [shape = 'u32[144,128]{1,0:T(1,128)}', space=vmem, size = 0x12000, scoped, tag = 'internal scratch']
  %s0 = inlined_call_operand.vmem [shape: f32[16,96], index: 0, kind: input, shape index: {}]
  %s1 = inlined_call_operand.vmem [shape: f32[96,64], index: 1, kind: input, shape index: {}]
  %s2 = inlined_call_operand.vmem [shape: f32[1,64], index: 2, kind: input, shape index: {}]
  %s3 = inlined_call_operand.vmem [shape: f32[64,32], index: 3, kind: input, shape index: {}]
  %s4 = inlined_call_operand.vmem [shape: f32[1,32], index: 4, kind: input, shape index: {}]
  %s5 = inlined_call_operand.vmem [shape: f32[32,2], index: 5, kind: input, shape index: {}]
  %s6 = inlined_call_operand.vmem [shape: f32[1,2], index: 6, kind: input, shape index: {}]
  %s7 = inlined_call_operand.vmem [shape: f32[16,2], index: 7, kind: output, shape index: {}]
  %s8 = sld [smem:[#allocation0]]
  $region61: #{mlp_forward.1} parent=0
    _
  %s10 = ssub.s32 1, %s8
  %s11 = scalar_select 0, %s10, %s8
  loop: start=0, step=1, limit=4
  $region2: #{mlp_forward.1} parent=0 // loop_pre_header
    _
  $region3: #{mlp_forward.1} parent=0 // loop_header
    %s13 = sphi 0, %s17
    %p14 = scmp.ge.s32.totalorder %s13, 4
    %s23 = sphi 0, %s25
    %s26 = sphi 0, %s23
    %s27 = sphi 0, %s26
    %s43 = sphi 0, %s27
    %s47 = sphi 0, %s47
    %s49 = sphi 0, %s47
    %s50 = sphi 0, %s49
    %s64 = sphi 0, %s50
    %s68 = sphi 0, %s68
    %s70 = sphi 0, %s68
    %s71 = sphi 0, %s70
    %s85 = sphi 0, %s71
    %s89 = sphi 0, %s89
    %s91 = sphi 0, %s89
    %s92 = sphi 0, %s91
    %s106 = sphi 0, %s92
    %s110 = sphi 0, %s110
    %s112 = sphi 0, %s110
    %s113 = sphi 0, %s112
    %s127 = sphi 0, %s113
    %s131 = sphi 0, %s131
    %s133 = sphi 0, %s131
    %s134 = sphi 0, %s133
    %s148 = sphi 0, %s134
    %s152 = sphi 0, %s152
    %s154 = sphi 0, %s152
    %s155 = sphi 0, %s154
    %s169 = sphi 0, %s155
    %s175 = sphi 0, %s177
    %s178 = sphi 0, %s175
    %s179 = sphi 0, %s178
    %s195 = sphi 0, %s179
  $region4: #{mlp_forward.1} parent=0 // loop_header_branch
    %16 = sbr.rel (%p14) target = $region8
  $region5: #{mlp_forward.1} parent=0 // loop_body
    %s18 = ssub.s32 %s13, 1
    %s19 = ssub.s32 %s13, 2
    %s20 = sadd.s32 %s13, 1
    %s21 = ssub.s32 %s13, %s20
    %p22 = scmp.eq.s32.totalorder %s21, 0
    %s24 = sadd.s32 %s23, 1
    %s25 = scalar_select %p22, %s23, %s24
    %p28 = pneg %p22
    %p29 = scmp.eq.s32.totalorder %s13, 1
    %p30 = por %p28, %p29
    %p31 = scmp.ne.s32.totalorder %s23, %s26
    %p32 = scmp.eq.s32.totalorder %s13, 0
    %p33 = por %p31, %p32
    %p34 = scmp.ne.s32.totalorder %s23, %s26
    %p35 = scmp.eq.s32.totalorder %s18, 1
    %p36 = por %p34, %p35
    %p37 = scmp.ne.s32.totalorder %s26, %s27
    %p38 = scmp.eq.s32.totalorder %s18, 0
    %p39 = por %p37, %p38
    %p40 = scmp.ne.s32.totalorder %s26, %s27
    %p41 = scmp.eq.s32.totalorder %s19, 1
    %p42 = por %p40, %p41
    %p44 = scmp.ne.s32.totalorder %s27, %s43
    %p45 = scmp.eq.s32.totalorder %s19, 0
    %p46 = por %p44, %p45
    %s48 = sadd.s32 %s47, 1
    %p51 = scmp.eq.s32.totalorder %s13, 1
    %p52 = scmp.ne.s32.totalorder %s47, %s49
    %p53 = scmp.eq.s32.totalorder %s13, 0
    %p54 = por %p52, %p53
    %p55 = scmp.ne.s32.totalorder %s47, %s49
    %p56 = scmp.eq.s32.totalorder %s18, 1
    %p57 = por %p55, %p56
    %p58 = scmp.ne.s32.totalorder %s49, %s50
    %p59 = scmp.eq.s32.totalorder %s18, 0
    %p60 = por %p58, %p59
    %p61 = scmp.ne.s32.totalorder %s49, %s50
    %p62 = scmp.eq.s32.totalorder %s19, 1
    %p63 = por %p61, %p62
    %p65 = scmp.ne.s32.totalorder %s50, %s64
    %p66 = scmp.eq.s32.totalorder %s19, 0
    %p67 = por %p65, %p66
    %s69 = sadd.s32 %s68, 1
    %p72 = scmp.eq.s32.totalorder %s13, 1
    %p73 = scmp.ne.s32.totalorder %s68, %s70
    %p74 = scmp.eq.s32.totalorder %s13, 0
    %p75 = por %p73, %p74
    %p76 = scmp.ne.s32.totalorder %s68, %s70
    %p77 = scmp.eq.s32.totalorder %s18, 1
    %p78 = por %p76, %p77
    %p79 = scmp.ne.s32.totalorder %s70, %s71
    %p80 = scmp.eq.s32.totalorder %s18, 0
    %p81 = por %p79, %p80
    %p82 = scmp.ne.s32.totalorder %s70, %s71
    %p83 = scmp.eq.s32.totalorder %s19, 1
    %p84 = por %p82, %p83
    %p86 = scmp.ne.s32.totalorder %s71, %s85
    %p87 = scmp.eq.s32.totalorder %s19, 0
    %p88 = por %p86, %p87
    %s90 = sadd.s32 %s89, 1
    %p93 = scmp.eq.s32.totalorder %s13, 1
    %p94 = scmp.ne.s32.totalorder %s89, %s91
    %p95 = scmp.eq.s32.totalorder %s13, 0
    %p96 = por %p94, %p95
    %p97 = scmp.ne.s32.totalorder %s89, %s91
    %p98 = scmp.eq.s32.totalorder %s18, 1
    %p99 = por %p97, %p98
    %p100 = scmp.ne.s32.totalorder %s91, %s92
    %p101 = scmp.eq.s32.totalorder %s18, 0
    %p102 = por %p100, %p101
    %p103 = scmp.ne.s32.totalorder %s91, %s92
    %p104 = scmp.eq.s32.totalorder %s19, 1
    %p105 = por %p103, %p104
    %p107 = scmp.ne.s32.totalorder %s92, %s106
    %p108 = scmp.eq.s32.totalorder %s19, 0
    %p109 = por %p107, %p108
    %s111 = sadd.s32 %s110, 1
    %p114 = scmp.eq.s32.totalorder %s13, 1
    %p115 = scmp.ne.s32.totalorder %s110, %s112
    %p116 = scmp.eq.s32.totalorder %s13, 0
    %p117 = por %p115, %p116
    %p118 = scmp.ne.s32.totalorder %s110, %s112
    %p119 = scmp.eq.s32.totalorder %s18, 1
    %p120 = por %p118, %p119
    %p121 = scmp.ne.s32.totalorder %s112, %s113
    %p122 = scmp.eq.s32.totalorder %s18, 0
    %p123 = por %p121, %p122
    %p124 = scmp.ne.s32.totalorder %s112, %s113
    %p125 = scmp.eq.s32.totalorder %s19, 1
    %p126 = por %p124, %p125
    %p128 = scmp.ne.s32.totalorder %s113, %s127
    %p129 = scmp.eq.s32.totalorder %s19, 0
    %p130 = por %p128, %p129
    %s132 = sadd.s32 %s131, 1
    %p135 = scmp.eq.s32.totalorder %s13, 1
    %p136 = scmp.ne.s32.totalorder %s131, %s133
    %p137 = scmp.eq.s32.totalorder %s13, 0
    %p138 = por %p136, %p137
    %p139 = scmp.ne.s32.totalorder %s131, %s133
    %p140 = scmp.eq.s32.totalorder %s18, 1
    %p141 = por %p139, %p140
    %p142 = scmp.ne.s32.totalorder %s133, %s134
    %p143 = scmp.eq.s32.totalorder %s18, 0
    %p144 = por %p142, %p143
    %p145 = scmp.ne.s32.totalorder %s133, %s134
    %p146 = scmp.eq.s32.totalorder %s19, 1
    %p147 = por %p145, %p146
    %p149 = scmp.ne.s32.totalorder %s134, %s148
    %p150 = scmp.eq.s32.totalorder %s19, 0
    %p151 = por %p149, %p150
    %s153 = sadd.s32 %s152, 1
    %p156 = scmp.eq.s32.totalorder %s13, 1
    %p157 = scmp.ne.s32.totalorder %s152, %s154
    %p158 = scmp.eq.s32.totalorder %s13, 0
    %p159 = por %p157, %p158
    %p160 = scmp.ne.s32.totalorder %s152, %s154
    %p161 = scmp.eq.s32.totalorder %s18, 1
    %p162 = por %p160, %p161
    %p163 = scmp.ne.s32.totalorder %s154, %s155
    %p164 = scmp.eq.s32.totalorder %s18, 0
    %p165 = por %p163, %p164
    %p166 = scmp.ne.s32.totalorder %s154, %s155
    %p167 = scmp.eq.s32.totalorder %s19, 1
    %p168 = por %p166, %p167
    %p170 = scmp.ne.s32.totalorder %s155, %s169
    %p171 = scmp.eq.s32.totalorder %s19, 0
    %p172 = por %p170, %p171
    %s173 = ssub.s32 %s13, %s20
    %p174 = scmp.eq.s32.totalorder %s173, 0
    %s176 = sadd.s32 %s175, 1
    %s177 = scalar_select %p174, %s175, %s176
    %p180 = pneg %p174
    %p181 = scmp.eq.s32.totalorder %s13, 1
    %p182 = por %p180, %p181
    %p183 = scmp.ne.s32.totalorder %s175, %s178
    %p184 = scmp.eq.s32.totalorder %s13, 0
    %p185 = por %p183, %p184
    %p186 = scmp.ne.s32.totalorder %s175, %s178
    %p187 = scmp.eq.s32.totalorder %s18, 1
    %p188 = por %p186, %p187
    %p189 = scmp.ne.s32.totalorder %s178, %s179
    %p190 = scmp.eq.s32.totalorder %s18, 0
    %p191 = por %p189, %p190
    %p192 = scmp.ne.s32.totalorder %s178, %s179
    %p193 = scmp.eq.s32.totalorder %s19, 1
    %p194 = por %p192, %p193
    %p196 = scmp.ne.s32.totalorder %s179, %s195
    %p197 = scmp.eq.s32.totalorder %s19, 0
    %p198 = por %p196, %p197
    %p199 = scmp.le.s32.totalorder 1, %s13
    %p200 = scmp.lt.s32.totalorder %s13, 3
    %p201 = pnand %p199, %p200
    %p202 = pneg %p201
    // Predicated region
    $region9: #{mlp_forward.1} parent=5 // pred_check
      _
    $region10: #{mlp_forward.1} parent=5 // pred_check_branch
      %204 = sbr.rel (%p201) target = $region12
    $region11: #{mlp_forward.1} parent=5 // pred_region
      %s205 = ssub.s32 %s13, 1
      // Predicated region
      $region13: #{mlp_forward.1} parent=11 // pred_check
        %p206 = pneg %p60
      $region14: #{mlp_forward.1} parent=11 // pred_check_branch
        %208 = sbr.rel (%p206) target = $region16
      $region15: #{mlp_forward.1} parent=11 // pred_region
        _
      $region16: #{mlp_forward.1} parent=11 // pred_fallthru
        _
      // Predicated region
      $region17: #{mlp_forward.1} parent=11 // pred_check
        %p209 = pneg %p81
      $region18: #{mlp_forward.1} parent=11 // pred_check_branch
        %211 = sbr.rel (%p209) target = $region20
      $region19: #{mlp_forward.1} parent=11 // pred_region
        _
      $region20: #{mlp_forward.1} parent=11 // pred_fallthru
        _
      // Predicated region
      $region21: #{mlp_forward.1} parent=11 // pred_check
        %p212 = pneg %p102
      $region22: #{mlp_forward.1} parent=11 // pred_check_branch
        %214 = sbr.rel (%p212) target = $region24
      $region23: #{mlp_forward.1} parent=11 // pred_region
        _
      $region24: #{mlp_forward.1} parent=11 // pred_fallthru
        _
      // Predicated region
      $region25: #{mlp_forward.1} parent=11 // pred_check
        %p215 = pneg %p123
      $region26: #{mlp_forward.1} parent=11 // pred_check_branch
        %217 = sbr.rel (%p215) target = $region28
      $region27: #{mlp_forward.1} parent=11 // pred_region
        _
      $region28: #{mlp_forward.1} parent=11 // pred_fallthru
        _
      // Predicated region
      $region29: #{mlp_forward.1} parent=11 // pred_check
        %p218 = pneg %p144
      $region30: #{mlp_forward.1} parent=11 // pred_check_branch
        %220 = sbr.rel (%p218) target = $region32
      $region31: #{mlp_forward.1} parent=11 // pred_region
        _
      $region32: #{mlp_forward.1} parent=11 // pred_fallthru
        _
      // Predicated region
      $region33: #{mlp_forward.1} parent=11 // pred_check
        %p221 = pneg %p165
      $region34: #{mlp_forward.1} parent=11 // pred_check_branch
        %223 = sbr.rel (%p221) target = $region36
      $region35: #{mlp_forward.1} parent=11 // pred_region
        _
      $region36: #{mlp_forward.1} parent=11 // pred_fallthru
        _
    $region12: #{mlp_forward.1} parent=5 // pred_fallthru
      _
    %p224 = scmp.lt.s32.totalorder %s13, 2
    // Predicated region
    $region37: #{mlp_forward.1} parent=5 // pred_check
      %p225 = pneg %p224
    $region38: #{mlp_forward.1} parent=5 // pred_check_branch
      %227 = sbr.rel (%p225) target = $region40
    $region39: #{mlp_forward.1} parent=5 // pred_region
      // Predicated region
      $region41: #{mlp_forward.1} parent=39 // pred_check
        %p228 = pneg %p33
      $region42: #{mlp_forward.1} parent=39 // pred_check_branch
        %230 = sbr.rel (%p228) target = $region44
      $region43: #{mlp_forward.1} parent=39 // pred_region
        %p231 = scmp.lt.s32.totalorder %s13, 1
        %s232 = scalar_select %p231, %s13, 1
        %s233 = smul.addr %s232, 8
        %s234 = scalar_lea.vmem %s0, %s233
      $region44: #{mlp_forward.1} parent=39 // pred_fallthru
        _
    $region40: #{mlp_forward.1} parent=5 // pred_fallthru
      _
    %p235 = scmp.le.s32.totalorder 1, %s13
    %p236 = scmp.lt.s32.totalorder %s13, 3
    %p237 = pnand %p235, %p236
    %p238 = pneg %p237
    // Predicated region
    $region45: #{mlp_forward.1} parent=5 // pred_check
      _
    $region46: #{mlp_forward.1} parent=5 // pred_check_branch
      %240 = sbr.rel (%p237) target = $region48
    $region47: #{mlp_forward.1} parent=5 // pred_region
      %s241 = ssub.s32 %s13, 1
      %p242 = scmp.lt.s32.totalorder %s18, 1
      %s243 = scalar_select %p242, %s18, 1
      %s244 = smul.addr %s243, 8
      %s245 = scalar_lea.vmem %s0, %s244
      %p246 = pneg %p39
      %p247 = pneg %p36
      %p248 = pneg %p60
      %p249 = pneg %p57
      %p250 = pneg %p81
      %p251 = pneg %p78
      %p252 = pneg %p102
      %p253 = pneg %p99
      %p254 = pneg %p123
      %p255 = pneg %p120
      %p256 = pneg %p144
      %p257 = pneg %p141
      %p258 = pneg %p165
      %p259 = pneg %p162
      %p260 = pneg %p191
      %p261 = pneg %p188
      %p262 = scmp.lt.s32.totalorder %s18, 1
      %s263 = scalar_select %p262, %s18, 1
      %s264 = smul.addr %s263, 8
      %s265 = scalar_lea.vmem %s7, %s264
      %p266 = scmp.lt.s32.totalorder %s18, 1
      %s267 = scalar_select %p266, %s18, 1
      %s268 = smul.addr %s267, 8
      %s269 = scalar_lea.vmem %s0, %s268
      %p270 = scmp.lt.s32.totalorder %s18, 1
      %s271 = scalar_select %p270, %s18, 1
      %s272 = smul.addr %s271, 8
      %s273 = scalar_lea.vmem %s7, %s272
      %v274 = vld [vmem:[%s269] sm:$0xff]
      %v275 = vld [vmem:[%s1] sm:$0xff]
      %v276 = vld [vmem:[%s1 + $0x8] sm:$0xff]
      %v277 = vld [vmem:[%s1 + $0x10] sm:$0xff]
      %v278 = vld [vmem:[%s1 + $0x18] sm:$0xff]
      %v279 = vld [vmem:[%s1 + $0x20] sm:$0xff]
      %v280 = vld [vmem:[%s1 + $0x28] sm:$0xff]
      %v281 = vld [vmem:[%s1 + $0x30] sm:$0xff]
      %v282 = vld [vmem:[%s1 + $0x38] sm:$0xff]
      %v283 = vld [vmem:[%s1 + $0x40] sm:$0xff]
      %v284 = vld [vmem:[%s1 + $0x48] sm:$0xff]
      %v285 = vld [vmem:[%s1 + $0x50] sm:$0xff]
      %v286 = vld [vmem:[%s1 + $0x58] sm:$0xff]
      %v287 = vld [vmem:[%s2] sm:$0x1]
      %v289 = vlaneseq
      %v290 = vshrl.u32 %v289, 7
      %v291 = vsub.s32 0, %v290
      %v292 = vrot.slane %v287, %v291
      %vm294 = vcmask 785408
      %v296 = vsel %vm294, %v274, 0
      %298 = vmatprep.subr.mxu0 0.0
      %299 = vmatpush1.msra.mxu0 0.0
      %300 = vmatprep.subr.mxu0 0.0
      %301 = vmatpush1.msra.mxu0 0.0
      %302 = vmatprep.subr.mxu0 0.0
      %303 = vmatpush1.msra.mxu0 0.0
      %304 = vmatprep.subr.mxu0 0.0
      %305 = vmatpush1.msra.mxu0 0.0
      %306 = vmatprep.subr.mxu0 0.0
      %307 = vmatpush1.msra.mxu0 %v286
      %308 = vmatprep.subr.mxu0 0.0
      %309 = vmatpush1.msra.mxu0 %v285
      %310 = vmatprep.subr.mxu0 0.0
      %311 = vmatpush1.msra.mxu0 %v284
      %312 = vmatprep.subr.mxu0 0.0
      %313 = vmatpush1.msra.mxu0 %v283
      %314 = vmatprep.subr.mxu0 0.0
      %315 = vmatpush1.msra.mxu0 %v282
      %316 = vmatprep.subr.mxu0 0.0
      %317 = vmatpush1.msra.mxu0 %v281
      %318 = vmatprep.subr.mxu0 0.0
      %319 = vmatpush1.msra.mxu0 %v280
      %320 = vmatprep.subr.mxu0 0.0
      %321 = vmatpush1.msra.mxu0 %v279
      %322 = vmatprep.subr.mxu0 0.0
      %323 = vmatpush1.msra.mxu0 %v278
      %324 = vmatprep.subr.mxu0 0.0
      %325 = vmatpush1.msra.mxu0 %v277
      %326 = vmatprep.subr.mxu0 0.0
      %327 = vmatpush1.msra.mxu0 %v276
      %328 = vmatprep.subr.mxu0 0.0
      %329 = vmatpush1.msra.mxu0 %v275
      %330 = vmatprep.subr.mxu0 0.0
      %331 = vmatpush2.msra.mxu0 0.0
      %332 = vmatprep.subr.mxu0 0.0
      %333 = vmatpush2.msra.mxu0 0.0
      %334 = vmatprep.subr.mxu0 0.0
      %335 = vmatpush2.msra.mxu0 0.0
      %336 = vmatprep.subr.mxu0 0.0
      %337 = vmatpush2.msra.mxu0 0.0
      %338 = vmatprep.subr.mxu0 0.0
      %339 = vmatpush2.msra.mxu0 0.0
      %340 = vmatprep.subr.mxu0 0.0
      %341 = vmatpush2.msra.mxu0 0.0
      %342 = vmatprep.subr.mxu0 0.0
      %343 = vmatpush2.msra.mxu0 0.0
      %344 = vmatprep.subr.mxu0 0.0
      %345 = vmatpush2.msra.mxu0 0.0
      %346 = vmatprep.subr.mxu0 0.0
      %347 = vmatpush2.msra.mxu0 0.0
      %348 = vmatprep.subr.mxu0 0.0
      %349 = vmatpush2.msra.mxu0 0.0
      %350 = vmatprep.subr.mxu0 0.0
      %351 = vmatpush2.msra.mxu0 0.0
      %352 = vmatprep.subr.mxu0 0.0
      %353 = vmatpush2.msra.mxu0 0.0
      %354 = vmatprep.subr.mxu0 0.0
      %355 = vmatpush2.msra.mxu0 0.0
      %356 = vmatprep.subr.mxu0 0.0
      %357 = vmatpush2.msra.mxu0 0.0
      %358 = vmatprep.subr.mxu0 0.0
      %359 = vmatpush2.msra.mxu0 0.0
      %360 = vmatprep.subr.mxu0 0.0
      %361 = vmatpush2.msra.mxu0 0.0
      %362 = vmatprep.mubr.f32.mxu0 0.0
      %363 = vmatmul.mubr.f32.gmra.mxu0 %v296
      %v364 = vpop.f32.mrf.mxu0
      %v365 = vadd.f32 %v292, %v364
      %v366 = vpop.f32.mrf.mxu0
      %367 = vdwg.mxu0
      %v368 = vmul.f32 %v365, 0.5
      %v369 = vmul.f32 %v365, 0.70710677
      %v370 = verf.f32.pop %v369
      %v371 = vadd.f32 %v370, 1.0
      %v372 = vmul.f32 %v368, %v371
      %v373 = vld [vmem:[%s3] sm:$0xff]
      %v374 = vld [vmem:[%s3 + $0x8] sm:$0xff]
      %v375 = vld [vmem:[%s3 + $0x10] sm:$0xff]
      %v376 = vld [vmem:[%s3 + $0x18] sm:$0xff]
      %v377 = vld [vmem:[%s3 + $0x20] sm:$0xff]
      %v378 = vld [vmem:[%s3 + $0x28] sm:$0xff]
      %v379 = vld [vmem:[%s3 + $0x30] sm:$0xff]
      %v380 = vld [vmem:[%s3 + $0x38] sm:$0xff]
      %v381 = vld [vmem:[%s4] sm:$0x1]
      %v383 = vlaneseq
      %v384 = vshrl.u32 %v383, 7
      %v385 = vsub.s32 0, %v384
      %v386 = vrot.slane %v381, %v385
      %vm388 = vcmask 523264
      %v390 = vsel %vm388, %v372, 0
      %392 = vmatprep.subr.mxu0 0.0
      %393 = vmatpush1.msra.mxu0 0.0
      %394 = vmatprep.subr.mxu0 0.0
      %395 = vmatpush1.msra.mxu0 0.0
      %396 = vmatprep.subr.mxu0 0.0
      %397 = vmatpush1.msra.mxu0 0.0
      %398 = vmatprep.subr.mxu0 0.0
      %399 = vmatpush1.msra.mxu0 0.0
      %400 = vmatprep.subr.mxu0 0.0
      %401 = vmatpush1.msra.mxu0 0.0
      %402 = vmatprep.subr.mxu0 0.0
      %403 = vmatpush1.msra.mxu0 0.0
      %404 = vmatprep.subr.mxu0 0.0
      %405 = vmatpush1.msra.mxu0 0.0
      %406 = vmatprep.subr.mxu0 0.0
      %407 = vmatpush1.msra.mxu0 0.0
      %408 = vmatprep.subr.mxu0 0.0
      %409 = vmatpush1.msra.mxu0 %v380
      %410 = vmatprep.subr.mxu0 0.0
      %411 = vmatpush1.msra.mxu0 %v379
      %412 = vmatprep.subr.mxu0 0.0
      %413 = vmatpush1.msra.mxu0 %v378
      %414 = vmatprep.subr.mxu0 0.0
      %415 = vmatpush1.msra.mxu0 %v377
      %416 = vmatprep.subr.mxu0 0.0
      %417 = vmatpush1.msra.mxu0 %v376
      %418 = vmatprep.subr.mxu0 0.0
      %419 = vmatpush1.msra.mxu0 %v375
      %420 = vmatprep.subr.mxu0 0.0
      %421 = vmatpush1.msra.mxu0 %v374
      %422 = vmatprep.subr.mxu0 0.0
      %423 = vmatpush1.msra.mxu0 %v373
      %424 = vmatprep.subr.mxu0 0.0
      %425 = vmatpush2.msra.mxu0 0.0
      %426 = vmatprep.subr.mxu0 0.0
      %427 = vmatpush2.msra.mxu0 0.0
      %428 = vmatprep.subr.mxu0 0.0
      %429 = vmatpush2.msra.mxu0 0.0
      %430 = vmatprep.subr.mxu0 0.0
      %431 = vmatpush2.msra.mxu0 0.0
      %432 = vmatprep.subr.mxu0 0.0
      %433 = vmatpush2.msra.mxu0 0.0
      %434 = vmatprep.subr.mxu0 0.0
      %435 = vmatpush2.msra.mxu0 0.0
      %436 = vmatprep.subr.mxu0 0.0
      %437 = vmatpush2.msra.mxu0 0.0
      %438 = vmatprep.subr.mxu0 0.0
      %439 = vmatpush2.msra.mxu0 0.0
      %440 = vmatprep.subr.mxu0 0.0
      %441 = vmatpush2.msra.mxu0 0.0
      %442 = vmatprep.subr.mxu0 0.0
      %443 = vmatpush2.msra.mxu0 0.0
      %444 = vmatprep.subr.mxu0 0.0
      %445 = vmatpush2.msra.mxu0 0.0
      %446 = vmatprep.subr.mxu0 0.0
      %447 = vmatpush2.msra.mxu0 0.0
      %448 = vmatprep.subr.mxu0 0.0
      %449 = vmatpush2.msra.mxu0 0.0
      %450 = vmatprep.subr.mxu0 0.0
      %451 = vmatpush2.msra.mxu0 0.0
      %452 = vmatprep.subr.mxu0 0.0
      %453 = vmatpush2.msra.mxu0 0.0
      %454 = vmatprep.subr.mxu0 0.0
      %455 = vmatpush2.msra.mxu0 0.0
      %456 = vmatprep.mubr.f32.mxu0 0.0
      %457 = vmatmul.mubr.f32.gmra.mxu0 %v390
      %v458 = vpop.f32.mrf.mxu0
      %v459 = vadd.f32 %v386, %v458
      %v460 = vpop.f32.mrf.mxu0
      %461 = vdwg.mxu0
      %v462 = vmul.f32 %v459, 0.5
      %v463 = vmul.f32 %v459, 0.70710677
      %v464 = verf.f32.pop %v463
      %v465 = vadd.f32 %v464, 1.0
      %v466 = vmul.f32 %v462, %v465
      %v467 = vld [vmem:[%s5] sm:$0xff]
      %v468 = vld [vmem:[%s5 + $0x8] sm:$0xff]
      %v469 = vld [vmem:[%s5 + $0x10] sm:$0xff]
      %v470 = vld [vmem:[%s5 + $0x18] sm:$0xff]
      %v471 = vld [vmem:[%s6] sm:$0x1]
      %v473 = vlaneseq
      %v474 = vshrl.u32 %v473, 7
      %v475 = vsub.s32 0, %v474
      %v476 = vrot.slane %v471, %v475
      %vm478 = vcmask 261120
      %v480 = vsel %vm478, %v466, 0
      %482 = vmatprep.subr.mxu0 0.0
      %483 = vmatpush1.msra.mxu0 0.0
      %484 = vmatprep.subr.mxu0 0.0
      %485 = vmatpush1.msra.mxu0 0.0
      %486 = vmatprep.subr.mxu0 0.0
      %487 = vmatpush1.msra.mxu0 0.0
      %488 = vmatprep.subr.mxu0 0.0
      %489 = vmatpush1.msra.mxu0 0.0
      %490 = vmatprep.subr.mxu0 0.0
      %491 = vmatpush1.msra.mxu0 0.0
      %492 = vmatprep.subr.mxu0 0.0
      %493 = vmatpush1.msra.mxu0 0.0
      %494 = vmatprep.subr.mxu0 0.0
      %495 = vmatpush1.msra.mxu0 0.0
      %496 = vmatprep.subr.mxu0 0.0
      %497 = vmatpush1.msra.mxu0 0.0
      %498 = vmatprep.subr.mxu0 0.0
      %499 = vmatpush1.msra.mxu0 0.0
      %500 = vmatprep.subr.mxu0 0.0
      %501 = vmatpush1.msra.mxu0 0.0
      %502 = vmatprep.subr.mxu0 0.0
      %503 = vmatpush1.msra.mxu0 0.0
      %504 = vmatprep.subr.mxu0 0.0
      %505 = vmatpush1.msra.mxu0 0.0
      %506 = vmatprep.subr.mxu0 0.0
      %507 = vmatpush1.msra.mxu0 %v470
      %508 = vmatprep.subr.mxu0 0.0
      %509 = vmatpush1.msra.mxu0 %v469
      %510 = vmatprep.subr.mxu0 0.0
      %511 = vmatpush1.msra.mxu0 %v468
      %512 = vmatprep.subr.mxu0 0.0
      %513 = vmatpush1.msra.mxu0 %v467
      %514 = vmatprep.subr.mxu0 0.0
      %515 = vmatpush2.msra.mxu0 0.0
      %516 = vmatprep.subr.mxu0 0.0
      %517 = vmatpush2.msra.mxu0 0.0
      %518 = vmatprep.subr.mxu0 0.0
      %519 = vmatpush2.msra.mxu0 0.0
      %520 = vmatprep.subr.mxu0 0.0
      %521 = vmatpush2.msra.mxu0 0.0
      %522 = vmatprep.subr.mxu0 0.0
      %523 = vmatpush2.msra.mxu0 0.0
      %524 = vmatprep.subr.mxu0 0.0
      %525 = vmatpush2.msra.mxu0 0.0
      %526 = vmatprep.subr.mxu0 0.0
      %527 = vmatpush2.msra.mxu0 0.0
      %528 = vmatprep.subr.mxu0 0.0
      %529 = vmatpush2.msra.mxu0 0.0
      %530 = vmatprep.subr.mxu0 0.0
      %531 = vmatpush2.msra.mxu0 0.0
      %532 = vmatprep.subr.mxu0 0.0
      %533 = vmatpush2.msra.mxu0 0.0
      %534 = vmatprep.subr.mxu0 0.0
      %535 = vmatpush2.msra.mxu0 0.0
      %536 = vmatprep.subr.mxu0 0.0
      %537 = vmatpush2.msra.mxu0 0.0
      %538 = vmatprep.subr.mxu0 0.0
      %539 = vmatpush2.msra.mxu0 0.0
      %540 = vmatprep.subr.mxu0 0.0
      %541 = vmatpush2.msra.mxu0 0.0
      %542 = vmatprep.subr.mxu0 0.0
      %543 = vmatpush2.msra.mxu0 0.0
      %544 = vmatprep.subr.mxu0 0.0
      %545 = vmatpush2.msra.mxu0 0.0
      %546 = vmatprep.mubr.f32.mxu0 0.0
      %547 = vmatmul.mubr.f32.gmra.mxu0 %v480
      %v548 = vpop.f32.mrf.mxu0
      %v549 = vadd.f32 %v476, %v548
      %v550 = vpop.f32.mrf.mxu0
      %551 = vdwg.mxu0
      %vm552 = vcmask 15360
      %553 = vst.msk [vmem:[%s273] sm:$0xff] %vm552, %v549
      %p554 = scmp.lt.s32.totalorder %s18, 1
      %s555 = scalar_select %p554, %s18, 1
      %s556 = smul.addr %s555, 8
      %s557 = scalar_lea.vmem %s7, %s556
      // Predicated region
      $region49: #{mlp_forward.1} parent=47 // pred_check
        %p558 = pneg %p188
      $region50: #{mlp_forward.1} parent=47 // pred_check_branch
        %560 = sbr.rel (%p558) target = $region52
      $region51: #{mlp_forward.1} parent=47 // pred_region
        _
      $region52: #{mlp_forward.1} parent=47 // pred_fallthru
        _
    $region48: #{mlp_forward.1} parent=5 // pred_fallthru
      _
    %p561 = scmp.le.s32.totalorder 2, %s13
    // Predicated region
    $region53: #{mlp_forward.1} parent=5 // pred_check
      %p562 = pneg %p561
    $region54: #{mlp_forward.1} parent=5 // pred_check_branch
      %564 = sbr.rel (%p562) target = $region56
    $region55: #{mlp_forward.1} parent=5 // pred_region
      %s565 = ssub.s32 %s13, 2
      // Predicated region
      $region57: #{mlp_forward.1} parent=55 // pred_check
        %p566 = pneg %p194
      $region58: #{mlp_forward.1} parent=55 // pred_check_branch
        %568 = sbr.rel (%p566) target = $region60
      $region59: #{mlp_forward.1} parent=55 // pred_region
        %p569 = scmp.lt.s32.totalorder %s19, 1
        %s570 = scalar_select %p569, %s19, 1
        %s571 = smul.addr %s570, 8
        %s572 = scalar_lea.vmem %s7, %s571
      $region60: #{mlp_forward.1} parent=55 // pred_fallthru
        _
    $region56: #{mlp_forward.1} parent=5 // pred_fallthru
      _
  $region6: #{mlp_forward.1} parent=0 // loop_footer
    %s17 = sadd.s32 1, %s13
  $region7: #{mlp_forward.1} parent=0 // loop_footer_branch
    %12 = sbr.rel target = $region3
  $region8: #{mlp_forward.1} parent=0 // loop_exit
    _

</llo_original>
